<compile_context>
chip_gen: v7x
topology: tpu7x:2x2x1
jax: 0.10.0
libtpu: 0.0.40
codegen_flags: <defaults>
</compile_context>

<pallas_src>
import functools

import jax
import jax.numpy as jnp
from jax.experimental import pallas as pl
from jax.experimental.pallas import tpu as pltpu


def _round_up(x, m):
    return (x + m - 1) // m * m


def _stats_tile(stats):
    """Place scalar statistics on separate sublanes of an (8,128) f32 tile."""
    sub = jax.lax.broadcasted_iota(jnp.int32, (8, 128), 0)
    tile = jnp.zeros((8, 128), jnp.float32)
    for k, s in enumerate(stats):
        tile = jnp.where(sub == k, s, tile)
    return tile


# ----------------------------------------------------------------------------
# Kernel 1: positive-focal-loss statistics over the [B, L, S] confidence matrix
# ----------------------------------------------------------------------------
def _focal_stats_kernel(conf_ref, gt_ref, out_ref, *, gamma):
    # Output block is VMEM-resident across the innermost ("arbitrary") grid
    # axis; init once and accumulate partial sums into it.
    @pl.when(pl.program_id(2) == 0)
    def _():
        out_ref[...] = jnp.zeros_like(out_ref)

    # conf arrives in its native dtype (bf16 or f32); upcast once after load.
    # dual_softmax conf <= 1, so only the lower clamp of the reference matters.
    conf = jnp.maximum(conf_ref[...].astype(jnp.float32), 1e-6)
    gt = gt_ref[...].astype(jnp.float32)      # mask-weighted 0/1 gt (bf16 in HBM)

    one_m = 1.0 - conf
    gi = int(round(gamma))
    if abs(float(gamma) - gi) < 1e-6 and 1 <= gi <= 4:
        pw = one_m
        for _ in range(gi - 1):               # integer gamma: plain VPU multiplies
            pw = pw * one_m
    else:
        pw = jnp.power(one_m, gamma)          # generic fallback

    # (-alpha) and pos_w are applied on the final scalar outside the kernel.
    pos_sum = jnp.sum(gt * pw * jnp.log(conf))
    pos_cnt = jnp.sum(gt)
    out_ref[0, 0] += _stats_tile([pos_sum, pos_cnt])


def focal_stats(conf_pred, b_idx, s_idx, t_idx, w_val, gamma):
    """Returns (sum over positives of w * (1-c)^g * log c, positive count,
    padded bf16 conf_gt matrix).

    NOTE: the dense pass is kept because conf_gt has to be materialized anyway
    (data['conf_matrix_gt']) and sum(conf_gt) gives scatter-deduped positive
    counts exactly like the reference; for very large L*S the positive-only
    focal sum could alternatively be an M-sparse gather of conf_pred at the gt
    indices.
    """
    B, L, S = conf_pred.shape

    # Tile sizes: full-dim-ish blocks for moderate L/S (minimal alignment pad),
    # 1024-sized tiles for very large coarse grids.
    if S > 1024:
        TS = 1024
        Sp = _round_up(S, TS)
    else:
        TS = Sp = _round_up(S, 128)
    if L > 1024:
        TL = 1024
        Lp = _round_up(L, TL)
    else:
        TL = Lp = _round_up(L, 16)            # 16 keeps bf16 sublane packing happy

    budget = 1024 * 1024                      # elements / grid step (~4-6 MiB)
    TB = max(1, min(B, budget // max(TL * TS, 1)))
    while B % TB:                             # TB must divide B (no batch pad)
        TB -= 1
    G_b, G_l, G_s = B // TB, Lp // TL, Sp // TS

    # Guarantee >= 2 grid blocks so both TensorCores get work on 2-TC chips.
    if G_b * G_l * G_s == 1:
        if B > 1:
            TB = max(1, TB // 2)
            while B % TB:
                TB -= 1
            G_b = B // TB
        elif TS >= 256 and TS % 256 == 0:
            TS //= 2
            G_s = Sp // TS

    # Build conf_gt directly at the padded shape with the src/tgt validity
    # weight folded into the scattered value (single fused batched scatter).
    # TODO(synk): gt matches falling outside src/tgt masks get value 0 here
    # (identical to the reference whenever gt matches lie in the valid region).
    conf_gt = (jnp.zeros((B, Lp, Sp), jnp.bfloat16)
               .at[b_idx, s_idx, t_idx].set(w_val))

    # At most one pad copy of conf (native dtype); skipped when already aligned.
    if (Lp, Sp) != (L, S):
        conf = jnp.pad(conf_pred, ((0, 0), (0, Lp - L), (0, Sp - S)))
    else:
        conf = conf_pred

    kernel = functools.partial(_focal_stats_kernel, gamma=float(gamma))
    out = pl.pallas_call(
        kernel,
        out_shape=jax.ShapeDtypeStruct((G_b, G_l, 8, 128), jnp.float32),
        grid_spec=pltpu.PrefetchScalarGridSpec(
            num_scalar_prefetch=0,
            grid=(G_b, G_l, G_s),
            in_specs=[
                pl.BlockSpec((TB, TL, TS), lambda gb, gl, gs: (gb, gl, gs)),
                pl.BlockSpec((TB, TL, TS), lambda gb, gl, gs: (gb, gl, gs)),
            ],
            out_specs=pl.BlockSpec((1, 1, 8, 128),
                                   lambda gb, gl, gs: (gb, gl, 0, 0)),
        ),
        compiler_params=pltpu.CompilerParams(
            dimension_semantics=("parallel", "parallel", "arbitrary"),
            vmem_limit_bytes=32 * 1024 * 1024),
    )(conf, conf_gt)

    pos_sum = jnp.sum(out[..., 0, 0])
    pos_cnt = jnp.sum(out[..., 1, 0])
    return pos_sum, pos_cnt, conf_gt


# ----------------------------------------------------------------------------
# Kernel 2: rigid-warp motion (masked L1 flow error) statistics
# ----------------------------------------------------------------------------
def _motion_kernel(dRt_ref, sp_ref, mask_ref, out_ref):
    b = pl.program_id(0)
    x = sp_ref[0, 0]                          # (TNr, 128) full (8,128) vregs
    y = sp_ref[0, 1]
    z = sp_ref[0, 2]
    m = mask_ref[0].astype(jnp.float32)       # bf16 overlap mask, upcast once
    e = jnp.zeros_like(m)
    for j in range(3):
        # (wrapped_pred - s) - (wrapped_gt - s) == dR @ p + dt   (delta xform)
        wj = (dRt_ref[b, 3 * j + 0] * x
              + dRt_ref[b, 3 * j + 1] * y
              + dRt_ref[b, 3 * j + 2] * z
              + dRt_ref[b, 9 + j])
        e = e + jnp.abs(wj)
    out_ref[0, 0] = _stats_tile([jnp.sum(e * m), jnp.sum(m)])


def motion_stats(s_pcd, b_idx, s_idx, R_pred, t_pred, R_gt, t_gt):
    B, N, _ = s_pcd.shape

    # Pad N to a multiple of 1024 so every (TNr,128) coordinate slab is whole
    # (8,128) vregs; padded points are masked out (mask scattered as 0).
    Np = _round_up(N, 1024)
    TN = min(Np, 64 * 1024)                   # ~0.9 MiB / step
    if B == 1 and Np >= 2048:                 # >= 2 grid blocks for 2-TC chips
        TN = max(1024, (Np // 2) // 1024 * 1024)
    Np = _round_up(Np, TN)
    G_n = Np // TN
    Nr, TNr = Np // 128, TN // 128

    # coordinate-major, lane-dense [B, 3, Nr, 128] layout
    sp = jnp.transpose(s_pcd.astype(jnp.float32), (0, 2, 1))        # (B,3,N)
    sp = jnp.pad(sp, ((0, 0), (0, 0), (0, Np - N))).reshape(B, 3, Nr, 128)

    # overlap mask scattered directly at the padded length, as bf16
    mask = (jnp.zeros((B, Np), jnp.bfloat16)
            .at[b_idx, s_idx].set(1.0)
            .reshape(B, Nr, 128))

    dR = (R_pred.astype(jnp.float32) - R_gt.astype(jnp.float32)).reshape(B, 9)
    dt = (t_pred.astype(jnp.float32) - t_gt.astype(jnp.float32)).reshape(B, 3)
    dRt = jnp.concatenate([dR, dt], axis=1)                          # (B, 12)

    smem = pl.BlockSpec(memory_space=pltpu.MemorySpace.SMEM)
    out = pl.pallas_call(
        _motion_kernel,
        out_shape=jax.ShapeDtypeStruct((B, G_n, 8, 128), jnp.float32),
        grid_spec=pltpu.PrefetchScalarGridSpec(
            num_scalar_prefetch=0,
            grid=(B, G_n),
            in_specs=[
                smem,
                pl.BlockSpec((1, 3, TNr, 128), lambda b, gn: (b, 0, gn, 0)),
                pl.BlockSpec((1, TNr, 128), lambda b, gn: (b, gn, 0)),
            ],
            out_specs=pl.BlockSpec((1, 1, 8, 128), lambda b, gn: (b, gn, 0, 0)),
        ),
        compiler_params=pltpu.CompilerParams(
            dimension_semantics=("parallel", "parallel")),
    )(dRt, sp, mask)

    err_sum = jnp.sum(out[..., 0, 0])
    cnt = jnp.sum(out[..., 1, 0])
    return err_sum, cnt


# ----------------------------------------------------------------------------
# MatchMotionLoss (forward / ge_coarse_loss) — Pallas-backed
# ----------------------------------------------------------------------------
class MatchMotionLossPallas:
    def __init__(self, config):
        self.focal_alpha = config['focal_alpha']
        self.focal_gamma = config['focal_gamma']
        self.pos_w = config['pos_weight']
        self.neg_w = config['neg_weight']
        self.mot_w = config['motion_weight']
        self.mat_w = config['match_weight']
        self.motion_loss_type = config['motion_loss_type']
        self.match_type = config['match_type']
        self.positioning_type = config['positioning_type']
        self.registration_threshold = config['registration_threshold']
        self.confidence_threshold_metric = config['confidence_threshold_metric']
        self.inlier_thr = config['inlier_thr']
        self.fmr_thr = config['fmr_thr']
        self.mutual_nearest = config['mutual_nearest']
        self.dataset = config['dataset']

    def forward(self, data):
        loss_info = {}
        loss = self.ge_coarse_loss(data, loss_info)
        loss_info.update({'loss': loss})
        return loss_info

    def ge_coarse_loss(self, data, loss_info):
        # Implements the '3dmatch' + 'dual_softmax' path.
        # TODO(synk): '4dmatch' coarse_flow deformation, the 'sinkhorn' match
        # loss and the 'procrustes' position_layers branch are not implemented.
        src_mask = data['src_mask']                 # [B, L] bool
        tgt_mask = data['tgt_mask']                 # [B, S] bool
        conf_pred = data['conf_matrix_pred']        # [B, L, S] float (native dtype)
        match_gt = data['coarse_matches']           # list of (src_idx, tgt_idx)
        R_gt = data['batched_rot']                  # [B, 3, 3]
        t_gt = data['batched_trn']                  # [B, 3, 1]
        match_pred = data['coarse_match_pred']      # [M, 3] int (b, s, t)

        B, L, S = conf_pred.shape

        # --- glue: flatten gt match indices once (shared by both kernels)
        b_idx = jnp.concatenate([jnp.full(sidx.shape, b, dtype=jnp.int32)
                                 for b, (sidx, _) in enumerate(match_gt)])
        s_idx = jnp.concatenate([sidx.astype(jnp.int32)
                                 for (sidx, _) in match_gt])
        t_idx = jnp.concatenate([tidx.astype(jnp.int32)
                                 for (_, tidx) in match_gt])
        # src/tgt validity weight folded into the scattered gt value
        w_val = (src_mask[b_idx, s_idx]
                 & tgt_mask[b_idx, t_idx]).astype(jnp.bfloat16)

        # --- Pallas kernel 1: positive focal sum + positive count (+ conf_gt)
        pos_sum, pos_cnt, conf_gt = focal_stats(
            conf_pred, b_idx, s_idx, t_idx, w_val, self.focal_gamma)
        data['conf_matrix_gt'] = conf_gt[:, :L, :S].astype(conf_pred.dtype)

        focal_coarse = jnp.where(
            pos_cnt > 0,
            (-self.pos_w * self.focal_alpha) * pos_sum / jnp.maximum(pos_cnt, 1.0),
            jnp.float32(0.0))

        # --- recall / precision via a tiny gather (no dense pred matrix)
        # TODO(synk): assumes coarse_match_pred has no duplicate rows (a dense
        # scatter would dedup them), which holds for mutual-NN / top-1 matching.
        M = int(match_pred.shape[0])
        if M > 0:
            tp_sum = jnp.sum(conf_gt[match_pred[:, 0], match_pred[:, 1],
                                     match_pred[:, 2]].astype(jnp.float32))
        else:
            tp_sum = jnp.float32(0.0)
        recall = tp_sum / jnp.maximum(pos_cnt, 1.0)     # sum(gt) denominator
        precision = tp_sum / max(M, 1)

        loss_info.update({'focal_coarse': focal_coarse,
                          'recall_coarse': recall,
                          'precision_coarse': precision})
        loss = self.mat_w * focal_coarse

        if self.mot_w > 0:
            R_pred = data['R_s2t_pred']
            t_pred = data['t_s2t_pred']
            # --- Pallas kernel 2: masked L1 flow error between pred & gt warps
            err_sum, cnt = motion_stats(data['s_pcd'], b_idx, s_idx,
                                        R_pred, t_pred, R_gt, t_gt)
            l1_loss = err_sum / jnp.maximum(cnt, 1.0)
            loss = loss + jnp.where(recall > 0.01,
                                    self.mot_w * l1_loss,
                                    jnp.float32(0.0))
        return loss


# ----------------------------------------------------------------------------
if __name__ == "__main__":
    key = jax.random.PRNGKey(0)
    B, L, S = 2, 64, 64
    N = L  # coarse source points == L

    config = dict(
        focal_alpha=0.25, focal_gamma=2.0,
        pos_weight=1.0, neg_weight=1.0,
        motion_weight=1.0, match_weight=1.0,
        motion_loss_type='L1',
        match_type='dual_softmax',
        positioning_type='oracle',
        registration_threshold=0.2,
        confidence_threshold_metric=0.05,
        inlier_thr=0.1, fmr_thr=0.05,
        mutual_nearest=False,
        dataset='3dmatch',
    )

    ks = jax.random.split(key, 8)
    conf_pred = jax.nn.softmax(jax.random.normal(ks[0], (B, L, S)), axis=-1)
    s_pcd = jax.random.normal(ks[1], (B, N, 3), dtype=jnp.float32)
    src_mask = jnp.ones((B, L), dtype=bool)
    tgt_mask = jnp.ones((B, S), dtype=bool)

    # ground-truth coarse matches: per-batch (src_idx, tgt_idx) pairs
    n_m = 16
    perm0 = jax.random.permutation(ks[2], S)[:n_m].astype(jnp.int32)
    perm1 = jax.random.permutation(ks[3], S)[:n_m].astype(jnp.int32)
    match_gt = [
        (jnp.arange(n_m, dtype=jnp.int32), perm0),
        (jnp.arange(n_m, dtype=jnp.int32), perm1),
    ]

    # predicted coarse matches: half correct, half perturbed
    mp = []
    for b, (sidx, tidx) in enumerate(match_gt):
        si = [int(v) for v in sidx]
        ti = [int(v) for v in tidx]
        for j in range(n_m // 2):
            mp.append([b, si[j], ti[j]])
        for j in range(n_m // 2, n_m):
            mp.append([b, si[j], (ti[j] + 1) % S])
    match_pred = jnp.array(mp, dtype=jnp.int32)

    R_gt = jnp.tile(jnp.eye(3, dtype=jnp.float32)[None], (B, 1, 1))
    t_gt = 0.1 * jax.random.normal(ks[4], (B, 3, 1), dtype=jnp.float32)
    R_pred = R_gt + 0.05 * jax.random.normal(ks[5], (B, 3, 3), dtype=jnp.float32)
    t_pred = t_gt + 0.05 * jax.random.normal(ks[6], (B, 3, 1), dtype=jnp.float32)

    data = {
        'src_mask': src_mask,
        'tgt_mask': tgt_mask,
        'conf_matrix_pred': conf_pred,
        'coarse_matches': match_gt,
        'coarse_match_pred': match_pred,
        'batched_rot': R_gt,
        'batched_trn': t_gt,
        'R_s2t_pred': R_pred,
        't_s2t_pred': t_pred,
        's_pcd': s_pcd,
    }

    loss_module = MatchMotionLossPallas(config)
    loss_info = loss_module.forward(data)
    jax.block_until_ready(loss_info['loss'])
    print("KERNEL_OK")
</pallas_src>

<mosaic_0001>
module attributes {stable_mosaic.version = 11 : i64} {
  func.func @_focal_stats_kernel(%arg0: i32, %arg1: i32, %arg2: i32, %arg3: memref<1x64x128xf32, #tpu.memory_space<vmem>>, %arg4: memref<1x64x128xbf16, #tpu.memory_space<vmem>>, %arg5: memref<1x1x8x128xf32, #tpu.memory_space<vmem>>) attributes {dimension_semantics = [#tpu.dimension_semantics<parallel>, #tpu.dimension_semantics<parallel>, #tpu.dimension_semantics<arbitrary>], iteration_bounds = array<i64: 2, 1, 1>, scalar_prefetch = 0 : i64, scratch_operands = 0 : i64, tpu.core_type = #tpu.core_type<tc>, window_params = [{transform_indices = @transform_0, window_bounds = array<i64: 1, 64, 128>}, {transform_indices = @transform_1, window_bounds = array<i64: 1, 64, 128>}, {transform_indices = @transform_2, window_bounds = array<i64: 1, 1, 8, 128>}]} {
    %c0_i32 = arith.constant 0 : i32
    %0 = arith.cmpi eq, %arg2, %c0_i32 : i32
    %1 = arith.extui %0 : i1 to i32
    %c0_i32_0 = arith.constant 0 : i32
    %2 = arith.cmpi ne, %1, %c0_i32_0 : i32
    scf.if %2 {
      %cst_19 = arith.constant 0.000000e+00 : f32
      %38 = vector.broadcast %cst_19 : f32 to vector<1x1x8x128xf32>
      %c0_20 = arith.constant 0 : index
      %c0_21 = arith.constant 0 : index
      %c0_22 = arith.constant 0 : index
      %c0_23 = arith.constant 0 : index
      %39 = vector.load %arg5[%c0_20, %c0_21, %c0_22, %c0_23] : memref<1x1x8x128xf32, #tpu.memory_space<vmem>>, vector<1x1x8x128xf32>
      tpu.vector_store %arg5[%c0_20, %c0_21, %c0_22, %c0_23], %38 {strides = array<i32>} : memref<1x1x8x128xf32, #tpu.memory_space<vmem>>, vector<1x1x8x128xf32>,
    } else {
    }
    %c0 = arith.constant 0 : index
    %c0_1 = arith.constant 0 : index
    %c0_2 = arith.constant 0 : index
    %3 = vector.load %arg3[%c0, %c0_1, %c0_2] : memref<1x64x128xf32, #tpu.memory_space<vmem>>, vector<1x64x128xf32>
    %cst = arith.constant 9.99999997E-7 : f32
    %4 = vector.broadcast %cst : f32 to vector<1x64x128xf32>
    %5 = arith.maximumf %3, %4 : vector<1x64x128xf32>
    %c0_3 = arith.constant 0 : index
    %c0_4 = arith.constant 0 : index
    %c0_5 = arith.constant 0 : index
    %6 = vector.load %arg4[%c0_3, %c0_4, %c0_5] : memref<1x64x128xbf16, #tpu.memory_space<vmem>>, vector<1x64x128xbf16>
    %7 = arith.extf %6 : vector<1x64x128xbf16> to vector<1x64x128xf32>
    %cst_6 = arith.constant 1.000000e+00 : f32
    %8 = vector.broadcast %cst_6 : f32 to vector<1x64x128xf32>
    %9 = arith.subf %8, %5 : vector<1x64x128xf32>
    %10 = arith.mulf %9, %9 : vector<1x64x128xf32>
    %11 = arith.mulf %7, %10 : vector<1x64x128xf32>
    %12 = math.log %5 : vector<1x64x128xf32>
    %13 = arith.mulf %11, %12 : vector<1x64x128xf32>
    %14 = vector.shape_cast %13 : vector<1x64x128xf32> to vector<1x1x64x128xf32>
    %cst_7 = arith.constant dense<0.000000e+00> : vector<1xf32>
    %15 = vector.multi_reduction <add>, %14, %cst_7 [1, 2, 3] : vector<1x1x64x128xf32> to vector<1xf32>
    %16 = vector.shape_cast %15 : vector<1xf32> to vector<1x1x1x1xf32>
    %17 = vector.extract %16[0, 0, 0, 0] : f32 from vector<1x1x1x1xf32>
    %18 = vector.shape_cast %7 : vector<1x64x128xf32> to vector<1x1x64x128xf32>
    %cst_8 = arith.constant dense<0.000000e+00> : vector<1xf32>
    %19 = vector.multi_reduction <add>, %18, %cst_8 [1, 2, 3] : vector<1x1x64x128xf32> to vector<1xf32>
    %20 = vector.shape_cast %19 : vector<1xf32> to vector<1x1x1x1xf32>
    %21 = vector.extract %20[0, 0, 0, 0] : f32 from vector<1x1x1x1xf32>
    %c0_9 = arith.constant 0 : index
    %c0_10 = arith.constant 0 : index
    %c0_11 = arith.constant 0 : index
    %c0_12 = arith.constant 0 : index
    %22 = vector.load %arg5[%c0_9, %c0_10, %c0_11, %c0_12] : memref<1x1x8x128xf32, #tpu.memory_space<vmem>>, vector<1x1x8x128xf32>
    %23 = vector.shape_cast %22 : vector<1x1x8x128xf32> to vector<8x128xf32>
    %24 = tpu.iota {dimensions = array<i32: 0>} : vector<8x128xi32>
    %cst_13 = arith.constant 0.000000e+00 : f32
    %25 = vector.broadcast %cst_13 : f32 to vector<8x128xf32>
    %c0_i32_14 = arith.constant 0 : i32
    %26 = vector.broadcast %c0_i32_14 : i32 to vector<8x128xi32>
    %27 = arith.cmpi eq, %24, %26 : vector<8x128xi32>
    %28 = vector.broadcast %17 : f32 to vector<8x128xf32>
    %29 = arith.select %27, %28, %25 : vector<8x128xi1>, vector<8x128xf32>
    %c1_i32 = arith.constant 1 : i32
    %30 = vector.broadcast %c1_i32 : i32 to vector<8x128xi32>
    %31 = arith.cmpi eq, %24, %30 : vector<8x128xi32>
    %32 = vector.broadcast %21 : f32 to vector<8x128xf32>
    %33 = arith.select %31, %32, %29 : vector<8x128xi1>, vector<8x128xf32>
    %34 = arith.addf %23, %33 : vector<8x128xf32>
    %c0_15 = arith.constant 0 : index
    %c0_16 = arith.constant 0 : index
    %c0_17 = arith.constant 0 : index
    %c0_18 = arith.constant 0 : index
    %35 = vector.load %arg5[%c0_15, %c0_16, %c0_17, %c0_18] : memref<1x1x8x128xf32, #tpu.memory_space<vmem>>, vector<1x1x8x128xf32>
    %36 = vector.shape_cast %35 : vector<1x1x8x128xf32> to vector<8x128xf32>
    %37 = vector.shape_cast %34 : vector<8x128xf32> to vector<1x1x8x128xf32>
    tpu.vector_store %arg5[%c0_15, %c0_16, %c0_17, %c0_18], %37 {strides = array<i32>} : memref<1x1x8x128xf32, #tpu.memory_space<vmem>>, vector<1x1x8x128xf32>,
    return
  }
  func.func @transform_0(%arg0: i32, %arg1: i32, %arg2: i32) -> (i32, i32, i32) {
    %c0_i32 = arith.constant 0 : i32
    return %arg0, %arg1, %arg2 : i32, i32, i32
  }
  func.func @transform_1(%arg0: i32, %arg1: i32, %arg2: i32) -> (i32, i32, i32) {
    %c0_i32 = arith.constant 0 : i32
    return %arg0, %arg1, %arg2 : i32, i32, i32
  }
  func.func @transform_2(%arg0: i32, %arg1: i32, %arg2: i32) -> (i32, i32, i32, i32) {
    %c0_i32 = arith.constant 0 : i32
    %c0_i32_0 = arith.constant 0 : i32
    %c0_i32_1 = arith.constant 0 : i32
    return %arg0, %arg1, %c0_i32, %c0_i32_0 : i32, i32, i32, i32
  }
}

</mosaic_0001>

<llo_original>
// kernel: tpu_custom_call.1
$region0: #{tpu_custom_call.1}
  #allocation0 [shape = 'u32[]', space=smem, size = 0x4, offset = 0x4, fixed_abs, tag = 'smem constant byte address 0x4 - core index']
  #allocation1 [shape = 'u32[144,128]{1,0:T(1,128)}', space=vmem, size = 0x12000, scoped, tag = 'internal scratch']
  %s0 = inlined_call_operand.hbm [shape: f32[2,64,128], index: 0, kind: input, shape index: {}]
  %s1 = inlined_call_operand.hbm [shape: bf16[2,64,128], index: 1, kind: input, shape index: {}]
  %s2 = inlined_call_operand.hbm [shape: f32[2,1,8,128], index: 2, kind: output, shape index: {}]
  %s3 = sld [smem:[#allocation0]]
  $region53: #{tpu_custom_call.1} parent=0
    _
  %s5 = ssub.s32 1, %s3
  %s6 = scalar_select 0, %s5, %s3
  $region1: #{tpu_custom_call.1} parent=0
    #allocation2 [shape = 'u8[65536]{0}', space=vmem, size = 0x10000, scoped, tag = 'input window, operand 0']
    #allocation3 [shape = 's32[2]{0}', space=sflag, size = 0x8, scoped, tag = 'scoped memory for tpu_custom_call.1']
    #allocation4 [shape = 's32[2]{0}', space=sflag, size = 0x8, scoped, tag = 'scoped memory for tpu_custom_call.1']
    #allocation5 [shape = 'u8[32768]{0}', space=vmem, size = 0x8000, scoped, tag = 'input window, operand 1']
    #allocation6 [shape = 's32[2]{0}', space=sflag, size = 0x8, scoped, tag = 'scoped memory for tpu_custom_call.1']
    #allocation7 [shape = 'u8[8192]{0}', space=vmem, size = 0x2000, scoped, tag = 'output window, operand 0']
    %7 = vsyncpa [#allocation3], 0
    %s8 = scalar_lea.sflag [#allocation3], 1
    %9 = vsyncpa %s8, 0
    %10 = vsyncpa [#allocation6], 0
    %s11 = scalar_lea.sflag [#allocation6], 1
    %12 = vsyncpa %s11, 0
    %13 = vsyncpa [#allocation4], 0
    %s14 = scalar_lea.sflag [#allocation4], 1
    %15 = vsyncpa %s14, 0
    loop: start=0, step=1, limit=4
    $region2: #{tpu_custom_call.1} parent=1 // loop_pre_header
      _
    $region3: #{tpu_custom_call.1} parent=1 // loop_header
      %s17 = sphi 0, %s21
      %p18 = scmp.ge.s32.totalorder %s17, 4
      %s24 = sphi 0, %s43
      %s25 = sphi 0, %s39
      %s26 = sphi 0, %s35
      %s27 = sphi 0, %s24
      %s28 = sphi 0, %s25
      %s29 = sphi 0, %s26
      %s30 = sphi 0, %s27
      %s31 = sphi 0, %s28
      %s32 = sphi 0, %s29
      %s50 = sphi 0, %s52
      %s53 = sphi 0, %s50
      %s54 = sphi 0, %s53
      %s70 = sphi 0, %s54
      %s80 = sphi 0, %s82
      %s83 = sphi 0, %s80
      %s84 = sphi 0, %s83
      %s100 = sphi 0, %s84
      %s108 = sphi 0, %s110
      %s111 = sphi 0, %s108
      %s112 = sphi 0, %s111
      %s128 = sphi 0, %s112
    $region4: #{tpu_custom_call.1} parent=1 // loop_header_branch
      %20 = sbr.rel (%p18) target = $region8
    $region5: #{tpu_custom_call.1} parent=1 // loop_body
      %s22 = ssub.s32 %s17, 1
      %s23 = ssub.s32 %s17, 2
      %s33 = sadd.s32 1, %s26
      %p34 = scmp.ge.s32.totalorder %s33, 1
      %s35 = scalar_select %p34, 0, %s33
      %s36 = sadd.s32 1, %s25
      %s37 = scalar_select %p34, %s36, %s25
      %p38 = scmp.ge.s32.totalorder %s37, 1
      %s39 = scalar_select %p38, 0, %s37
      %s40 = sadd.s32 1, %s24
      %s41 = scalar_select %p38, %s40, %s24
      %p42 = scmp.ge.s32.totalorder %s41, 2
      %s43 = scalar_select %p42, 0, %s41
      %s44 = ssub.s32 %s24, %s43
      %s45 = ssub.s32 %s25, %s39
      %s46 = sor.u32 %s44, %s45
      %s47 = ssub.s32 %s26, %s35
      %s48 = sor.u32 %s46, %s47
      %p49 = scmp.eq.s32.totalorder %s48, 0
      %s51 = sadd.s32 %s50, 1
      %s52 = scalar_select %p49, %s50, %s51
      %p55 = pneg %p49
      %p56 = scmp.eq.s32.totalorder %s17, 1
      %p57 = por %p55, %p56
      %p58 = scmp.ne.s32.totalorder %s50, %s53
      %p59 = scmp.eq.s32.totalorder %s17, 0
      %p60 = por %p58, %p59
      %p61 = scmp.ne.s32.totalorder %s50, %s53
      %p62 = scmp.eq.s32.totalorder %s22, 1
      %p63 = por %p61, %p62
      %p64 = scmp.ne.s32.totalorder %s53, %s54
      %p65 = scmp.eq.s32.totalorder %s22, 0
      %p66 = por %p64, %p65
      %p67 = scmp.ne.s32.totalorder %s53, %s54
      %p68 = scmp.eq.s32.totalorder %s23, 1
      %p69 = por %p67, %p68
      %p71 = scmp.ne.s32.totalorder %s54, %s70
      %p72 = scmp.eq.s32.totalorder %s23, 0
      %p73 = por %p71, %p72
      %s74 = ssub.s32 %s24, %s43
      %s75 = ssub.s32 %s25, %s39
      %s76 = sor.u32 %s74, %s75
      %s77 = ssub.s32 %s26, %s35
      %s78 = sor.u32 %s76, %s77
      %p79 = scmp.eq.s32.totalorder %s78, 0
      %s81 = sadd.s32 %s80, 1
      %s82 = scalar_select %p79, %s80, %s81
      %p85 = pneg %p79
      %p86 = scmp.eq.s32.totalorder %s17, 1
      %p87 = por %p85, %p86
      %p88 = scmp.ne.s32.totalorder %s80, %s83
      %p89 = scmp.eq.s32.totalorder %s17, 0
      %p90 = por %p88, %p89
      %p91 = scmp.ne.s32.totalorder %s80, %s83
      %p92 = scmp.eq.s32.totalorder %s22, 1
      %p93 = por %p91, %p92
      %p94 = scmp.ne.s32.totalorder %s83, %s84
      %p95 = scmp.eq.s32.totalorder %s22, 0
      %p96 = por %p94, %p95
      %p97 = scmp.ne.s32.totalorder %s83, %s84
      %p98 = scmp.eq.s32.totalorder %s23, 1
      %p99 = por %p97, %p98
      %p101 = scmp.ne.s32.totalorder %s84, %s100
      %p102 = scmp.eq.s32.totalorder %s23, 0
      %p103 = por %p101, %p102
      %s104 = ssub.s32 %s24, %s43
      %s105 = ssub.s32 %s25, %s39
      %s106 = sor.u32 %s104, %s105
      %p107 = scmp.eq.s32.totalorder %s106, 0
      %s109 = sadd.s32 %s108, 1
      %s110 = scalar_select %p107, %s108, %s109
      %p113 = pneg %p107
      %p114 = scmp.eq.s32.totalorder %s17, 1
      %p115 = por %p113, %p114
      %p116 = scmp.ne.s32.totalorder %s108, %s111
      %p117 = scmp.eq.s32.totalorder %s17, 0
      %p118 = por %p116, %p117
      %p119 = scmp.ne.s32.totalorder %s108, %s111
      %p120 = scmp.eq.s32.totalorder %s22, 1
      %p121 = por %p119, %p120
      %p122 = scmp.ne.s32.totalorder %s111, %s112
      %p123 = scmp.eq.s32.totalorder %s22, 0
      %p124 = por %p122, %p123
      %p125 = scmp.ne.s32.totalorder %s111, %s112
      %p126 = scmp.eq.s32.totalorder %s23, 1
      %p127 = por %p125, %p126
      %p129 = scmp.ne.s32.totalorder %s112, %s128
      %p130 = scmp.eq.s32.totalorder %s23, 0
      %p131 = por %p129, %p130
      %p132 = scmp.le.s32.totalorder 1, %s17
      %p133 = scmp.lt.s32.totalorder %s17, 3
      %p134 = pnand %p132, %p133
      %p135 = pneg %p134
      // Predicated region
      $region9: #{tpu_custom_call.1} parent=5 // pred_check
        _
      $region10: #{tpu_custom_call.1} parent=5 // pred_check_branch
        %137 = sbr.rel (%p134) target = $region12
      $region11: #{tpu_custom_call.1} parent=5 // pred_region
        %s138 = ssub.s32 %s17, 1
      $region12: #{tpu_custom_call.1} parent=5 // pred_fallthru
        _
      %p139 = scmp.lt.s32.totalorder %s17, 2
      // Predicated region
      $region13: #{tpu_custom_call.1} parent=5 // pred_check
        %p140 = pneg %p139
      $region14: #{tpu_custom_call.1} parent=5 // pred_check_branch
        %142 = sbr.rel (%p140) target = $region16
      $region15: #{tpu_custom_call.1} parent=5 // pred_region
        // Predicated region
        $region17: #{tpu_custom_call.1} parent=15 // pred_check
          %p143 = pneg %p60
        $region18: #{tpu_custom_call.1} parent=15 // pred_check_branch
          %145 = sbr.rel (%p143) target = $region20
        $region19: #{tpu_custom_call.1} parent=15 // pred_region
          %s146 = sand.u32 %s50, 1
          %s147 = scalar_lea.sflag [#allocation3], %s146
          %s148 = sand.u32 %s50, 1
          %s149 = smul.addr %s148, 64
          %s150 = scalar_lea.vmem [#allocation2], %s149
          %s151 = smul.u32 8, %s25
          %s153 = ssub.s32 1024, 1024
          %154 = vsyncadd %s147, %s153
          %s155 = sadd.s32 %s26, %s151
          %s156 = smul.addr %s24, 8
          %s157 = sadd.s32 %s155, %s156
          %s158 = smul.addr %s157, 128
          %s159 = scalar_lea.hbm %s0, %s158
          %s160 = sshll.u32 %s150, 4
          %s161 = int_to_ptr.vmem [resolvable:$true] %s160
          %166 = dma.hbm_to_vmem [thread:$0]  %s159, 1024, %s161, %s147, 128, 128, 8
        $region20: #{tpu_custom_call.1} parent=15 // pred_fallthru
          _
        // Predicated region
        $region21: #{tpu_custom_call.1} parent=15 // pred_check
          %p167 = pneg %p90
        $region22: #{tpu_custom_call.1} parent=15 // pred_check_branch
          %169 = sbr.rel (%p167) target = $region24
        $region23: #{tpu_custom_call.1} parent=15 // pred_region
          %s170 = sand.u32 %s80, 1
          %s171 = scalar_lea.sflag [#allocation6], %s170
          %s172 = sand.u32 %s80, 1
          %s173 = smul.addr %s172, 32
          %s174 = scalar_lea.vmem [#allocation5], %s173
          %s175 = smul.u32 8, %s25
          %s177 = ssub.s32 512, 512
          %178 = vsyncadd %s171, %s177
          %s179 = sadd.s32 %s26, %s175
          %s180 = smul.addr %s24, 8
          %s181 = sadd.s32 %s179, %s180
          %s182 = smul.addr %s181, 64
          %s183 = scalar_lea.hbm %s1, %s182
          %s184 = sshll.u32 %s174, 4
          %s185 = int_to_ptr.vmem [resolvable:$true] %s184
          %190 = dma.hbm_to_vmem [thread:$0]  %s183, 512, %s185, %s171, 64, 64, 4
        $region24: #{tpu_custom_call.1} parent=15 // pred_fallthru
          _
      $region16: #{tpu_custom_call.1} parent=5 // pred_fallthru
        _
      %p191 = scmp.le.s32.totalorder 1, %s17
      %p192 = scmp.lt.s32.totalorder %s17, 3
      %p193 = pnand %p191, %p192
      %p194 = pneg %p193
      // Predicated region
      $region25: #{tpu_custom_call.1} parent=5 // pred_check
        _
      $region26: #{tpu_custom_call.1} parent=5 // pred_check_branch
        %196 = sbr.rel (%p193) target = $region28
      $region27: #{tpu_custom_call.1} parent=5 // pred_region
        %s197 = ssub.s32 %s17, 1
        %s198 = sand.u32 %s53, 1
        %s199 = scalar_lea.sflag [#allocation3], %s198
        %s200 = sand.u32 %s53, 1
        %s201 = smul.addr %s200, 64
        %s202 = scalar_lea.vmem [#allocation2], %s201
        // Predicated region
        $region29: #{tpu_custom_call.1} parent=27 // pred_check
          %p203 = pneg %p66
        $region30: #{tpu_custom_call.1} parent=27 // pred_check_branch
          %205 = sbr.rel (%p203) target = $region32
        $region31: #{tpu_custom_call.1} parent=27 // pred_region
          %206 = dma.done %s199, 1024
        $region32: #{tpu_custom_call.1} parent=27 // pred_fallthru
          _
        %s207 = sand.u32 %s83, 1
        %s208 = scalar_lea.sflag [#allocation6], %s207
        %s209 = sand.u32 %s83, 1
        %s210 = smul.addr %s209, 32
        %s211 = scalar_lea.vmem [#allocation5], %s210
        // Predicated region
        $region33: #{tpu_custom_call.1} parent=27 // pred_check
          %p212 = pneg %p96
        $region34: #{tpu_custom_call.1} parent=27 // pred_check_branch
          %214 = sbr.rel (%p212) target = $region36
        $region35: #{tpu_custom_call.1} parent=27 // pred_region
          %215 = dma.done %s208, 512
        $region36: #{tpu_custom_call.1} parent=27 // pred_fallthru
          _
        %s216 = sand.u32 %s53, 1
        %s217 = scalar_lea.sflag [#allocation3], %s216
        %s218 = sand.u32 %s53, 1
        %s219 = smul.addr %s218, 64
        %s220 = scalar_lea.vmem [#allocation2], %s219
        %p221 = pneg %p66
        %p222 = pneg %p63
        %s223 = sand.u32 %s83, 1
        %s224 = scalar_lea.sflag [#allocation6], %s223
        %s225 = sand.u32 %s83, 1
        %s226 = smul.addr %s225, 32
        %s227 = scalar_lea.vmem [#allocation5], %s226
        %p228 = pneg %p96
        %p229 = pneg %p93
        %p230 = pneg %p124
        %p231 = pneg %p121
        %s232 = sand.u32 %s111, 1
        %s233 = scalar_lea.sflag [#allocation4], %s232
        %s234 = sand.u32 %s111, 1
        %s235 = smul.addr %s234, 8
        %s236 = scalar_lea.vmem [#allocation7], %s235
        %s237 = smul.u32 8, %s28
        %s238 = smul.u32 8, %s28
        %p239 = scmp.eq.s32.totalorder %s29, 0
        // Predicated region
        $region37: #{tpu_custom_call.1} parent=27 // pred_check
          %p240 = pneg %p239
        $region38: #{tpu_custom_call.1} parent=27 // pred_check_branch
          %242 = sbr.rel (%p240) target = $region40
        $region39: #{tpu_custom_call.1} parent=27 // pred_region
          %243 = vst [vmem:[%s236] sm:$0xff] 0.0
        $region40: #{tpu_custom_call.1} parent=27 // pred_fallthru
          _
        %v244 = vld [vmem:[%s202] sm:$0xff]
        %v245 = vld [vmem:[%s202 + $0x8] sm:$0xff]
        %v246 = vld [vmem:[%s202 + $0x10] sm:$0xff]
        %v247 = vld [vmem:[%s202 + $0x18] sm:$0xff]
        %v248 = vld [vmem:[%s202 + $0x20] sm:$0xff]
        %v249 = vld [vmem:[%s202 + $0x28] sm:$0xff]
        %v250 = vld [vmem:[%s202 + $0x30] sm:$0xff]
        %v251 = vld [vmem:[%s202 + $0x38] sm:$0xff]
        %v252 = vmax.f32 %v244, 1e-06
        %v253 = vmax.f32 %v245, 1e-06
        %v254 = vmax.f32 %v246, 1e-06
        %v255 = vmax.f32 %v247, 1e-06
        %v256 = vmax.f32 %v248, 1e-06
        %v257 = vmax.f32 %v249, 1e-06
        %v258 = vmax.f32 %v250, 1e-06
        %v259 = vmax.f32 %v251, 1e-06
        %v260 = vld [vmem:[%s211] sm:$0xf]
        %v261 = vld [vmem:[%s211 + $0x4] sm:$0xf]
        %v262 = vld [vmem:[%s211 + $0x8] sm:$0xf]
        %v263 = vld [vmem:[%s211 + $0xc] sm:$0xf]
        %v264 = vld [vmem:[%s211 + $0x10] sm:$0xf]
        %v265 = vld [vmem:[%s211 + $0x14] sm:$0xf]
        %v266 = vld [vmem:[%s211 + $0x18] sm:$0xf]
        %v267 = vld [vmem:[%s211 + $0x1c] sm:$0xf]
        %v268 = vunpack.c.l.bf16 %v260
        %v269 = vunpack.c.l.bf16 %v261
        %v270 = vunpack.c.l.bf16 %v262
        %v271 = vunpack.c.l.bf16 %v263
        %v272 = vunpack.c.l.bf16 %v264
        %v273 = vunpack.c.l.bf16 %v265
        %v274 = vunpack.c.l.bf16 %v266
        %v275 = vunpack.c.l.bf16 %v267
        %v276 = vsub.f32 1.0, %v252
        %v277 = vsub.f32 1.0, %v253
        %v278 = vsub.f32 1.0, %v254
        %v279 = vsub.f32 1.0, %v255
        %v280 = vsub.f32 1.0, %v256
        %v281 = vsub.f32 1.0, %v257
        %v282 = vsub.f32 1.0, %v258
        %v283 = vsub.f32 1.0, %v259
        %v284 = vmul.f32 %v276, %v276
        %v285 = vmul.f32 %v277, %v277
        %v286 = vmul.f32 %v278, %v278
        %v287 = vmul.f32 %v279, %v279
        %v288 = vmul.f32 %v280, %v280
        %v289 = vmul.f32 %v281, %v281
        %v290 = vmul.f32 %v282, %v282
        %v291 = vmul.f32 %v283, %v283
        %v292 = vmul.f32 %v268, %v284
        %v293 = vmul.f32 %v269, %v285
        %v294 = vmul.f32 %v270, %v286
        %v295 = vmul.f32 %v271, %v287
        %v296 = vmul.f32 %v272, %v288
        %v297 = vmul.f32 %v273, %v289
        %v298 = vmul.f32 %v274, %v290
        %v299 = vmul.f32 %v275, %v291
        %v300 = vlog2.pop %v252
        %v301 = vmul.f32 %v300, 0.6931472
        %v302 = vlog2.pop %v253
        %v303 = vmul.f32 %v302, 0.6931472
        %v304 = vlog2.pop %v254
        %v305 = vmul.f32 %v304, 0.6931472
        %v306 = vlog2.pop %v255
        %v307 = vmul.f32 %v306, 0.6931472
        %v308 = vlog2.pop %v256
        %v309 = vmul.f32 %v308, 0.6931472
        %v310 = vlog2.pop %v257
        %v311 = vmul.f32 %v310, 0.6931472
        %v312 = vlog2.pop %v258
        %v313 = vmul.f32 %v312, 0.6931472
        %v314 = vlog2.pop %v259
        %v315 = vmul.f32 %v314, 0.6931472
        %v316 = vmul.f32 %v292, %v301
        %v317 = vmul.f32 %v293, %v303
        %v318 = vmul.f32 %v294, %v305
        %v319 = vmul.f32 %v295, %v307
        %v320 = vmul.f32 %v296, %v309
        %v321 = vmul.f32 %v297, %v311
        %v322 = vmul.f32 %v298, %v313
        %v323 = vmul.f32 %v299, %v315
        %v324 = vadd.f32 %v316, %v317
        %v325 = vadd.f32 %v324, %v318
        %v326 = vadd.f32 %v325, %v319
        %v327 = vadd.f32 %v326, %v320
        %v328 = vadd.f32 %v327, %v321
        %v329 = vadd.f32 %v328, %v322
        %v330 = vadd.f32 %v329, %v323
        %331 = vadd.xlane.f32.xlu0 %v330
        %v332 = vpop.xlane.xlu0 %331
        %v333 = vrot.slane %v332, 4
        %v334 = vadd.f32 %v332, %v333
        %v335 = vrot.slane %v334, 2
        %v336 = vadd.f32 %v334, %v335
        %v337 = vrot.slane %v336, 1
        %v338 = vadd.f32 %v336, %v337
        %s339 = vtos %v338
        %v340 = vadd.f32 %v268, %v269
        %v341 = vadd.f32 %v340, %v270
        %v342 = vadd.f32 %v341, %v271
        %v343 = vadd.f32 %v342, %v272
        %v344 = vadd.f32 %v343, %v273
        %v345 = vadd.f32 %v344, %v274
        %v346 = vadd.f32 %v345, %v275
        %347 = vadd.xlane.f32.xlu0 %v346
        %v348 = vpop.xlane.xlu0 %347
        %v349 = vrot.slane %v348, 4
        %v350 = vadd.f32 %v348, %v349
        %v351 = vrot.slane %v350, 2
        %v352 = vadd.f32 %v350, %v351
        %v353 = vrot.slane %v352, 1
        %v354 = vadd.f32 %v352, %v353
        %s355 = vtos %v354
        %v356 = vld [vmem:[%s236] sm:$0xff]
        %v357 = vlaneseq
        %v358 = vshrl.u32 %v357, 7
        %vm359 = vcmp.eq.s32.totalorder %v358, 0
        %v360 = vstv %s339
        %v361 = vsel %vm359, %v360, 0.0
        %vm362 = vcmp.eq.s32.totalorder %v358, 1
        %v363 = vstv %s355
        %v364 = vsel %vm362, %v363, %v361
        %v365 = vadd.f32 %v356, %v364
        %366 = vst [vmem:[%s236] sm:$0xff] %v365
        %s367 = sand.u32 %s111, 1
        %s368 = scalar_lea.sflag [#allocation4], %s367
        %s369 = sand.u32 %s111, 1
        %s370 = smul.addr %s369, 8
        %s371 = scalar_lea.vmem [#allocation7], %s370
        // Predicated region
        $region41: #{tpu_custom_call.1} parent=27 // pred_check
          %p372 = pneg %p121
        $region42: #{tpu_custom_call.1} parent=27 // pred_check_branch
          %374 = sbr.rel (%p372) target = $region44
        $region43: #{tpu_custom_call.1} parent=27 // pred_region
          %s376 = ssub.s32 128, 128
          %377 = vsyncadd %s368, %s376
          %s378 = sadd.s32 %s28, %s27
          %s379 = smul.addr %s378, 128
          %s380 = scalar_lea.hbm %s2, %s379
          %s382 = sshll.u32 %s371, 4
          %s383 = int_to_ptr.vmem [resolvable:$true] %s382
          %385 = dma.vmem_to_hbm [thread:$0]  %s383, 128, %s380, %s368
        $region44: #{tpu_custom_call.1} parent=27 // pred_fallthru
          _
      $region28: #{tpu_custom_call.1} parent=5 // pred_fallthru
        _
      %p386 = scmp.le.s32.totalorder 2, %s17
      // Predicated region
      $region45: #{tpu_custom_call.1} parent=5 // pred_check
        %p387 = pneg %p386
      $region46: #{tpu_custom_call.1} parent=5 // pred_check_branch
        %389 = sbr.rel (%p387) target = $region48
      $region47: #{tpu_custom_call.1} parent=5 // pred_region
        %s390 = ssub.s32 %s17, 2
        // Predicated region
        $region49: #{tpu_custom_call.1} parent=47 // pred_check
          %p391 = pneg %p127
        $region50: #{tpu_custom_call.1} parent=47 // pred_check_branch
          %393 = sbr.rel (%p391) target = $region52
        $region51: #{tpu_custom_call.1} parent=47 // pred_region
          %s394 = sand.u32 %s112, 1
          %s395 = scalar_lea.sflag [#allocation4], %s394
          %s396 = sand.u32 %s112, 1
          %s397 = smul.addr %s396, 8
          %s398 = scalar_lea.vmem [#allocation7], %s397
          %399 = dma.done %s395, 128
        $region52: #{tpu_custom_call.1} parent=47 // pred_fallthru
          _
      $region48: #{tpu_custom_call.1} parent=5 // pred_fallthru
        _
    $region6: #{tpu_custom_call.1} parent=1 // loop_footer
      %s21 = sadd.s32 1, %s17
    $region7: #{tpu_custom_call.1} parent=1 // loop_footer_branch
      %16 = sbr.rel target = $region3
    $region8: #{tpu_custom_call.1} parent=1 // loop_exit
      _
    %400 = vsyncpa [#allocation3], 1
    %s401 = scalar_lea.sflag [#allocation3], 1
    %402 = vsyncpa %s401, 1
    %403 = vsyncpa [#allocation6], 1
    %s404 = scalar_lea.sflag [#allocation6], 1
    %405 = vsyncpa %s404, 1
    %406 = vsyncpa [#allocation4], 1
    %s407 = scalar_lea.sflag [#allocation4], 1
    %408 = vsyncpa %s407, 1

</llo_original>
